<compile_context>
chip_gen: v5e
topology: v5e:2x2
jax: 0.10.0
libtpu: 0.0.40
codegen_flags: <defaults>
</compile_context>

<pallas_src>
import functools
import math

import jax
import jax.numpy as jnp
from jax.experimental import pallas as pl
from jax.experimental.pallas import tpu as pltpu


def _cdiv(a, b):
    return -(-a // b)


def _make_magnitude_kernel(p):
    """Build a kernel computing the L-p norm over axis 1 of an (nb, C, hw_tile) block."""
    if p in ('fro', 2, 2.0, None):
        def kernel(x_ref, o_ref):
            x = x_ref[...].astype(jnp.float32)             # (nb, C, hw_tile)
            o_ref[...] = jnp.sqrt(jnp.sum(x * x, axis=1)).astype(o_ref.dtype)
    elif p in (1, 1.0):
        def kernel(x_ref, o_ref):
            x = x_ref[...].astype(jnp.float32)
            o_ref[...] = jnp.sum(jnp.abs(x), axis=1).astype(o_ref.dtype)
    elif p in (math.inf, float('inf')):
        def kernel(x_ref, o_ref):
            x = x_ref[...].astype(jnp.float32)
            o_ref[...] = jnp.max(jnp.abs(x), axis=1).astype(o_ref.dtype)
    else:
        pf = float(p)
        def kernel(x_ref, o_ref):
            x = x_ref[...].astype(jnp.float32)
            s = jnp.sum(jnp.abs(x) ** pf, axis=1)
            o_ref[...] = (s ** (1.0 / pf)).astype(o_ref.dtype)
    return kernel


def _target_f32_block_bytes():
    """Per-generation f32-equivalent block-byte target (bigger blocks on faster HBM)."""
    try:
        kind = jax.devices()[0].device_kind.lower()
    except Exception:
        return 4 << 20
    if 'v7' in kind:
        return 8 << 20      # ~3.2 TB/s HBM: amortize the ~0.35 us per-step overhead
    if 'v6' in kind:
        return 6 << 20
    return 4 << 20          # v5e etc.: 4 MiB already ~86% of roofline


def _plan_blocks(N, C, HW, target_f32_bytes):
    """Choose (nb, hw_tile).

    Constraints (output block is (nb, hw_tile) of an (N, HW) array):
      * nb must be a multiple of 8, or equal N.
      * hw_tile must be a multiple of 128, or equal HW.
    The input block (nb, C, hw_tile) only constrains its last two dims (C is full).
    Block size is measured in f32-equivalent bytes so the in-kernel upcast temps
    are covered by the same budget.
    """
    nb_unit = 8 if N >= 8 else N                     # minimal legal batch granule
    row_f32_bytes = C * 4                            # one hw column across channels, f32

    # 1) HW tile: fit the minimal batch granule into the target when possible.
    max_hw = max(1, target_f32_bytes // (nb_unit * row_f32_bytes))
    if max_hw >= HW or HW <= 128:
        hw_tile = HW
    else:
        hw_tile = max(128, (max_hw // 128) * 128)

    # 2) Batch tile: fill the remaining budget with multiples of the granule.
    blk_f32_bytes = nb_unit * C * hw_tile * 4
    mult = max(1, target_f32_bytes // blk_f32_bytes)
    nb = nb_unit * mult
    if nb >= N:
        nb = N
    else:
        nb = (nb // nb_unit) * nb_unit               # multiple of 8 (nb_unit)

    # 3) Guarantee >= 2 grid steps for non-trivial inputs (pipelining, v7x megacore).
    total_f32_bytes = N * C * HW * 4
    if _cdiv(N, nb) * _cdiv(HW, hw_tile) < 2 and total_f32_bytes > (1 << 20):
        if HW >= 256:
            hw_tile = max(128, ((HW // 2) // 128) * 128)
        elif N >= 2 * nb_unit:
            nb = max(nb_unit, ((N // 2) // nb_unit) * nb_unit)

    return nb, hw_tile


def _norm_ref(x, p):
    """Plain-jnp reference / tiny-input fast path: torch.norm(x, dim=1, p=p)."""
    xf = x.astype(jnp.float32)
    if p in ('fro', 2, 2.0, None):
        r = jnp.sqrt(jnp.sum(xf * xf, axis=1))
    elif p in (1, 1.0):
        r = jnp.sum(jnp.abs(xf), axis=1)
    elif p in (math.inf, float('inf')):
        r = jnp.max(jnp.abs(xf), axis=1)
    else:
        pf = float(p)
        r = jnp.sum(jnp.abs(xf) ** pf, axis=1) ** (1.0 / pf)
    return r.astype(x.dtype)


@functools.partial(jax.jit, static_argnames=('p', 'force_pallas', 'target_block_bytes'))
def magnitude_forward(x, p='fro', force_pallas=False, target_block_bytes=None):
    """Pallas implementation of Magnitude.forward: torch.norm(x, dim=1, p=p)."""
    N, C, H, W = x.shape
    HW = H * W
    itemsize = x.dtype.itemsize

    # Fast path: for tiny activations the fixed pallas_call overhead dominates;
    # XLA's fused elementwise+reduce is strictly faster.
    if not force_pallas and N * C * HW * itemsize <= (1 << 20):
        return _norm_ref(x, p)

    # Free metadata reshape on a contiguous NCHW array: lane-dense last dim.
    x2 = x.reshape(N, C, HW)

    target = int(target_block_bytes) if target_block_bytes else _target_f32_block_bytes()
    nb, hw_tile = _plan_blocks(N, C, HW, target)
    grid = (_cdiv(N, nb), _cdiv(HW, hw_tile))

    # VMEM budget: double-buffered input + output blocks, f32 upcast temporaries,
    # plus headroom; capped at 48 MiB so it fits v7x's 64 MiB physical VMEM.
    in_block_bytes = nb * C * hw_tile * itemsize
    out_block_bytes = nb * hw_tile * itemsize
    f32_tmp_bytes = nb * C * hw_tile * 4 * 2
    vmem_needed = 2 * in_block_bytes + 2 * out_block_bytes + f32_tmp_bytes + (4 << 20)
    vmem_limit = int(min(max(vmem_needed, 32 << 20), 48 << 20))

    # Advisory cost estimate (fro: mul+add per element; sqrt per output element).
    transcendentals = 0 if p in (1, 1.0, math.inf, float('inf')) else N * HW
    cost = pl.CostEstimate(
        flops=2 * N * C * HW,
        transcendentals=transcendentals,
        bytes_accessed=N * C * HW * itemsize + N * HW * itemsize,
    )

    kernel = _make_magnitude_kernel(p)

    out2 = pl.pallas_call(
        kernel,
        out_shape=jax.ShapeDtypeStruct((N, HW), x.dtype),
        grid=grid,
        in_specs=[pl.BlockSpec((nb, C, hw_tile), lambda i, j: (i, 0, j))],
        out_specs=pl.BlockSpec((nb, hw_tile), lambda i, j: (i, j)),
        compiler_params=pltpu.CompilerParams(
            dimension_semantics=("parallel", "parallel"),
            vmem_limit_bytes=vmem_limit,
        ),
        cost_estimate=cost,
    )(x2)

    return out2.reshape(N, H, W)


if __name__ == "__main__":
    key = jax.random.PRNGKey(0)

    def check(x, p, **kw):
        out = jax.block_until_ready(magnitude_forward(x, p=p, **kw))
        ref = _norm_ref(x, p)
        assert out.shape == ref.shape, (out.shape, ref.shape)
        assert jnp.allclose(out, ref, atol=1e-5, rtol=1e-5), f"mismatch for p={p}, shape={x.shape}"

    # Small Conv2d-activation-like input (NCHW), consistent with the module.
    k1, k2, k3 = jax.random.split(key, 3)
    x_small = jax.random.normal(k1, (2, 4, 16, 16), dtype=jnp.float32)
    check(x_small, 'fro', force_pallas=True)          # default L2 over channel dim
    check(x_small, 1, force_pallas=True)              # L1 path
    check(x_small, math.inf, force_pallas=True)       # L-inf path

    # Slightly larger input with a tiny block target to exercise the 2-D grid
    # (multiple batch and HW tiles) while staying small.
    x_mid = jax.random.normal(k2, (16, 8, 32, 32), dtype=jnp.float32)
    check(x_mid, 'fro', force_pallas=True, target_block_bytes=64 * 1024)

    # Non-128-multiple HW (7x7) and N not a multiple of 8 -> partial trailing N block.
    x_odd = jax.random.normal(k3, (10, 8, 7, 7), dtype=jnp.float32)
    check(x_odd, 'fro', force_pallas=True, target_block_bytes=12 * 1024)

    # Auto (fast) path sanity check on the tiny input.
    check(x_small, 'fro')

    print("KERNEL_OK")
</pallas_src>

<mosaic_0001>
module attributes {stable_mosaic.version = 11 : i64} {
  func.func @kernel(%arg0: i32, %arg1: i32, %arg2: memref<2x4x256xf32, #tpu.memory_space<vmem>>, %arg3: memref<2x256xf32, #tpu.memory_space<vmem>>) attributes {dimension_semantics = [#tpu.dimension_semantics<parallel>, #tpu.dimension_semantics<parallel>], iteration_bounds = array<i64: 1, 1>, scalar_prefetch = 0 : i64, scratch_operands = 0 : i64, tpu.core_type = #tpu.core_type<tc>, window_params = [{transform_indices = @transform_0, window_bounds = array<i64: 2, 4, 256>}, {transform_indices = @transform_1, window_bounds = array<i64: 2, 256>}]} {
    %c0 = arith.constant 0 : index
    %c0_0 = arith.constant 0 : index
    %c0_1 = arith.constant 0 : index
    %0 = vector.load %arg2[%c0, %c0_0, %c0_1] : memref<2x4x256xf32, #tpu.memory_space<vmem>>, vector<2x4x256xf32>
    %1 = arith.mulf %0, %0 : vector<2x4x256xf32>
    %cst = arith.constant dense<0.000000e+00> : vector<2x256xf32>
    %2 = vector.multi_reduction <add>, %1, %cst [1] : vector<2x4x256xf32> to vector<2x256xf32>
    %3 = math.sqrt %2 : vector<2x256xf32>
    %c0_2 = arith.constant 0 : index
    %c0_3 = arith.constant 0 : index
    %4 = vector.load %arg3[%c0_2, %c0_3] : memref<2x256xf32, #tpu.memory_space<vmem>>, vector<2x256xf32>
    tpu.vector_store %arg3[%c0_2, %c0_3], %3 {strides = array<i32>} : memref<2x256xf32, #tpu.memory_space<vmem>>, vector<2x256xf32>,
    return
  }
  func.func @transform_0(%arg0: i32, %arg1: i32) -> (i32, i32, i32) {
    %c0_i32 = arith.constant 0 : i32
    %c0_i32_0 = arith.constant 0 : i32
    return %arg0, %c0_i32, %arg1 : i32, i32, i32
  }
  func.func @transform_1(%arg0: i32, %arg1: i32) -> (i32, i32) {
    %c0_i32 = arith.constant 0 : i32
    return %arg0, %arg1 : i32, i32
  }
}

</mosaic_0001>

<llo_original>
// kernel: magnitude_forward.1
$region0: #{magnitude_forward.1}
  #allocation0 [shape = 'u32[]', space=smem, size = 0x4, offset = 0x4, fixed_abs, tag = 'smem constant byte address 0x4 - core index']
  #allocation1 [shape = 'u32[72,128]{1,0:T(1,128)}', space=vmem, size = 0x9000, scoped, tag = 'internal scratch']
  %s0 = inlined_call_operand.vmem [shape: f32[2,4,256], index: 0, kind: input, shape index: {}]
  %s1 = inlined_call_operand.vmem [shape: f32[2,256], index: 1, kind: output, shape index: {}]
  %s2 = sld [smem:[#allocation0]]
  $region14: #{magnitude_forward.1} parent=0
    _
  %s4 = ssub.s32 1, %s2
  %s5 = scalar_select 0, %s4, %s2
  // Predicated region
  $region2: #{magnitude_forward.1} parent=0 // pred_check
    _
  $region3: #{magnitude_forward.1} parent=0 // pred_check_branch
    %7 = sbr.rel (0) target = $region5
  $region4: #{magnitude_forward.1} parent=0 // pred_region
    _
  $region5: #{magnitude_forward.1} parent=0 // pred_fallthru
    _
  %v8 = vld [vmem:[%s0] sm:$0xff]
  %v9 = vld [vmem:[%s0 + $0x8] sm:$0xff]
  %v10 = vmul.f32 %v8, %v8
  %v11 = vmul.f32 %v9, %v9
  %14 = vst [vmem:[#allocation1] ss:$2 sm:$0xff] %v10
  %v15 = vld.sshfl [vmem:[#allocation1] sm:$0xff pattern:$0x75316420]
  %v16 = vld.sshfl [vmem:[#allocation1 + $0x8] sm:$0xff pattern:$0x75316420]
  %s17 = scalar_lea.vmem [#allocation1], 16
  %18 = vst [vmem:[%s17] ss:$2 sm:$0xff] %v11
  %v19 = vld.sshfl [vmem:[#allocation1 + $0x10] sm:$0xff pattern:$0x75316420]
  %v20 = vld.sshfl [vmem:[#allocation1 + $0x18] sm:$0xff pattern:$0x75316420]
  %vm25 = vcmask 1043456
  %v26 = vsel %vm25, %v15, 0.0
  %v27 = vrot.slane %v26, 4
  %v28 = vadd.f32 %v26, %v27
  %v29 = vrot.slane %v28, 2
  %v30 = vadd.f32 %v28, %v29
  %v31 = vrot.slane %v30, 1
  %v32 = vadd.f32 %v30, %v31
  %v33 = vsel %vm25, %v16, 0.0
  %v34 = vrot.slane %v33, 4
  %v35 = vadd.f32 %v33, %v34
  %v36 = vrot.slane %v35, 2
  %v37 = vadd.f32 %v35, %v36
  %v38 = vrot.slane %v37, 1
  %v39 = vadd.f32 %v37, %v38
  %v40 = vsel %vm25, %v19, 0.0
  %v41 = vrot.slane %v40, 4
  %v42 = vadd.f32 %v40, %v41
  %v43 = vrot.slane %v42, 2
  %v44 = vadd.f32 %v42, %v43
  %v45 = vrot.slane %v44, 1
  %v46 = vadd.f32 %v44, %v45
  %v47 = vsel %vm25, %v20, 0.0
  %v48 = vrot.slane %v47, 4
  %v49 = vadd.f32 %v47, %v48
  %v50 = vrot.slane %v49, 2
  %v51 = vadd.f32 %v49, %v50
  %v52 = vrot.slane %v51, 1
  %v53 = vadd.f32 %v51, %v52
  %v54 = vrsqrt.pop %v32
  %v55 = vmul.f32 %v54, %v32
  %v56 = vmul.f32 %v55, %v54
  %v57 = vmul.f32 0.5, %v56
  %v58 = vsub.f32 1.5, %v57
  %v59 = vmul.f32 %v54, %v58
  %v60 = vmul.f32 %v32, %v59
  %vm61 = vcmp.eq.f32.partialorder %v32, inf
  %v62 = vsel %vm61, %v32, %v60
  %vm63 = vcmp.eq.f32.partialorder %v32, 0.0
  %v64 = vand.u32 %v32, 2147483648
  %v65 = vsel %vm63, %v64, %v62
  %v66 = vrsqrt.pop %v39
  %v67 = vmul.f32 %v66, %v39
  %v68 = vmul.f32 %v67, %v66
  %v69 = vmul.f32 0.5, %v68
  %v70 = vsub.f32 1.5, %v69
  %v71 = vmul.f32 %v66, %v70
  %v72 = vmul.f32 %v39, %v71
  %vm73 = vcmp.eq.f32.partialorder %v39, inf
  %v74 = vsel %vm73, %v39, %v72
  %vm75 = vcmp.eq.f32.partialorder %v39, 0.0
  %v76 = vand.u32 %v39, 2147483648
  %v77 = vsel %vm75, %v76, %v74
  %v78 = vrsqrt.pop %v46
  %v79 = vmul.f32 %v78, %v46
  %v80 = vmul.f32 %v79, %v78
  %v81 = vmul.f32 0.5, %v80
  %v82 = vsub.f32 1.5, %v81
  %v83 = vmul.f32 %v78, %v82
  %v84 = vmul.f32 %v46, %v83
  %vm85 = vcmp.eq.f32.partialorder %v46, inf
  %v86 = vsel %vm85, %v46, %v84
  %vm87 = vcmp.eq.f32.partialorder %v46, 0.0
  %v88 = vand.u32 %v46, 2147483648
  %v89 = vsel %vm87, %v88, %v86
  %v90 = vrsqrt.pop %v53
  %v91 = vmul.f32 %v90, %v53
  %v92 = vmul.f32 %v91, %v90
  %v93 = vmul.f32 0.5, %v92
  %v94 = vsub.f32 1.5, %v93
  %v95 = vmul.f32 %v90, %v94
  %v96 = vmul.f32 %v53, %v95
  %vm97 = vcmp.eq.f32.partialorder %v53, inf
  %v98 = vsel %vm97, %v53, %v96
  %vm99 = vcmp.eq.f32.partialorder %v53, 0.0
  %v100 = vand.u32 %v53, 2147483648
  %v101 = vsel %vm99, %v100, %v98
  %v106 = vrot.slane %v77, 6
  %v107 = vrot.slane %v101, 6
  %vm108 = vcmask 1041408
  %v109 = vsel %vm108, %v65, %v106
  %v110 = vsel %vm108, %v89, %v107
  %vm111 = vcmask 1044484
  %v112 = vsel %vm111, %v109, %v109
  %vm113 = vcmask 1046534
  %v114 = vsel %vm113, %v109, %v112
  %v115 = vrot.slane %v110, 7
  %vm116 = vcmask 1041409
  %v117 = vsel %vm116, %v115, %v114
  %vm118 = vcmask 1043459
  %v119 = vsel %vm118, %v115, %v117
  %vm120 = vcmask 1045509
  %v121 = vsel %vm120, %v115, %v119
  %vm122 = vcmask 1047559
  %v123 = vsel %vm122, %v115, %v121
  %125 = vst [vmem:[%s1] sm:$0xf] %v123
  // Predicated region
  $region6: #{magnitude_forward.1} parent=0 // pred_check
    _
  $region7: #{magnitude_forward.1} parent=0 // pred_check_branch
    %127 = sbr.rel (0) target = $region9
  $region8: #{magnitude_forward.1} parent=0 // pred_region
    _
  $region9: #{magnitude_forward.1} parent=0 // pred_fallthru
    _
  // Predicated region
  $region10: #{magnitude_forward.1} parent=0 // pred_check
    _
  $region11: #{magnitude_forward.1} parent=0 // pred_check_branch
    %129 = sbr.rel (0) target = $region13
  $region12: #{magnitude_forward.1} parent=0 // pred_region
    _
  $region13: #{magnitude_forward.1} parent=0 // pred_fallthru
    _

</llo_original>
